<compile_context>
chip_gen: v6e
topology: v6e:2x2x1
jax: 0.10.0
libtpu: 0.0.40
codegen_flags: <defaults>
</compile_context>

<pallas_src>
import math
import functools

import jax
import jax.numpy as jnp
from jax import lax
from jax.experimental import pallas as pl
from jax.experimental.pallas import tpu as pltpu

BN_EPS = 1e-5                      # PyTorch BatchNorm1d default
_INV_SQRT2 = 1.0 / math.sqrt(2.0)
_HEAD_PAD = 128                    # lane-dense output slab width


def _gelu(x):
    # Exact GELU (PyTorch nn.GELU default): 0.5*x*(1+erf(x/sqrt(2))), in f32.
    return 0.5 * x * (1.0 + lax.erf(x * _INV_SQRT2))


# --------------------------------------------------------------------------
# Kernel: one batch tile per grid step. All weights resident in VMEM.
# --------------------------------------------------------------------------
def recommender_kernel(
    x_ref,
    w1_ref, b1_ref,        # feature_extraction Linear(D,256) with BN folded in
    w2_ref, b2_ref,        # hidden block 0     Linear(256,128) with BN folded in
    w3_ref, b3_ref,        # hidden block 1     Linear(128,64)  with BN folded in
    ws_ref, bs_ref,        # skip_connection    Linear(D,64)
    w4_ref, b4_ref,        # output_layer[0]    Linear(64,32)
    w5_ref, b5_ref,        # output_layer[2]    Linear(32,1), zero-padded to 128 lanes
    o_ref,
):
    x = x_ref[...].astype(jnp.float32)
    xb = x.astype(jnp.bfloat16)

    def lin(h_bf16, w_ref, b_ref):
        # bf16 x bf16 matmul, f32 accumulation on the MXU; bias add in f32.
        return jnp.dot(h_bf16, w_ref[...],
                       preferred_element_type=jnp.float32) + b_ref[...]

    # Linear+BN (pre-folded) + GELU; Dropout is identity at inference.
    h = _gelu(lin(xb, w1_ref, b1_ref))
    h = _gelu(lin(h.astype(jnp.bfloat16), w2_ref, b2_ref))
    h = _gelu(lin(h.astype(jnp.bfloat16), w3_ref, b3_ref))

    # Residual skip from the raw input.
    h = h + lin(xb, ws_ref, bs_ref)

    # Output head: Linear(64,32) -> GELU -> Linear(32,1) (padded to 128 lanes,
    # real result lives in column 0; the rest are zeros).
    h = _gelu(lin(h.astype(jnp.bfloat16), w4_ref, b4_ref))
    out = lin(h.astype(jnp.bfloat16), w5_ref, b5_ref)      # (TILE_B, 128)
    o_ref[...] = out.astype(o_ref.dtype)


# --------------------------------------------------------------------------
# Parameter init (matches PyTorch _initialize_weights) and BN-folding prep.
# --------------------------------------------------------------------------
def init_params(key, input_dim, hidden_dims=(256, 128, 64)):
    """Kaiming-normal (fan_out, relu gain) linear weights, zero biases,
    BatchNorm gamma=1 / beta=0. Running stats are randomized here so the
    BN-folding path is actually exercised by the correctness check."""
    def kaiming(k, d_in, d_out):
        std = math.sqrt(2.0 / d_out)  # mode='fan_out', nonlinearity='relu'
        return (std * jax.random.normal(k, (d_in, d_out))).astype(jnp.float32)

    keys = jax.random.split(key, 12)
    p = {}

    def bn(k_m, k_v, n, idx):
        p[f"g{idx}"] = jnp.ones((1, n), jnp.float32)
        p[f"be{idx}"] = jnp.zeros((1, n), jnp.float32)
        p[f"m{idx}"] = 0.1 * jax.random.normal(k_m, (1, n)).astype(jnp.float32)
        p[f"v{idx}"] = (1.0 + 0.1 * jax.random.uniform(k_v, (1, n))).astype(jnp.float32)

    p["w1"] = kaiming(keys[0], input_dim, hidden_dims[0])
    p["b1"] = jnp.zeros((1, hidden_dims[0]), jnp.float32)
    bn(keys[1], keys[2], hidden_dims[0], 1)

    p["w2"] = kaiming(keys[3], hidden_dims[0], hidden_dims[1])
    p["b2"] = jnp.zeros((1, hidden_dims[1]), jnp.float32)
    bn(keys[4], keys[5], hidden_dims[1], 2)

    p["w3"] = kaiming(keys[6], hidden_dims[1], hidden_dims[2])
    p["b3"] = jnp.zeros((1, hidden_dims[2]), jnp.float32)
    bn(keys[7], keys[8], hidden_dims[2], 3)

    p["ws"] = kaiming(keys[9], input_dim, hidden_dims[2])
    p["bs"] = jnp.zeros((1, hidden_dims[2]), jnp.float32)

    p["w4"] = kaiming(keys[10], hidden_dims[2], 32)
    p["b4"] = jnp.zeros((1, 32), jnp.float32)
    p["w5"] = kaiming(keys[11], 32, 1)
    p["b5"] = jnp.zeros((1, 1), jnp.float32)
    return p


def prepare_params(p):
    """Fold eval-mode BN into the preceding Linear, cast weights to bf16,
    zero-pad the 32->1 head to 128 lanes for a lane-dense output slab."""
    def fold(w, b, g, be, m, v):
        scale = g * lax.rsqrt(v + BN_EPS)          # (1, out)
        return w * scale, (b - m) * scale + be

    w1, b1 = fold(p["w1"], p["b1"], p["g1"], p["be1"], p["m1"], p["v1"])
    w2, b2 = fold(p["w2"], p["b2"], p["g2"], p["be2"], p["m2"], p["v2"])
    w3, b3 = fold(p["w3"], p["b3"], p["g3"], p["be3"], p["m3"], p["v3"])

    w5p = jnp.zeros((p["w5"].shape[0], _HEAD_PAD), jnp.float32)
    w5p = w5p.at[:, 0].set(p["w5"][:, 0])
    b5p = jnp.zeros((1, _HEAD_PAD), jnp.float32)
    b5p = b5p.at[0, 0].set(p["b5"][0, 0])

    bf = lambda w: w.astype(jnp.bfloat16)
    return {
        "w1": bf(w1), "b1": b1,
        "w2": bf(w2), "b2": b2,
        "w3": bf(w3), "b3": b3,
        "ws": bf(p["ws"]), "bs": p["bs"],
        "w4": bf(p["w4"]), "b4": p["b4"],
        "w5": bf(w5p), "b5": b5p,
    }


_PREP_ORDER = ["w1", "b1", "w2", "b2", "w3", "b3", "ws", "bs", "w4", "b4", "w5", "b5"]


def _choose_tile_b(batch):
    # Multiple of 256 (v6e/v7x MXU) and 128 (v5e MXU) at large batch; capped at
    # 1024 rows so double-buffered tiles + 256-wide f32 intermediates stay far
    # below v7x's 64 MiB VMEM. Small batches run in a single 8-row-aligned tile.
    if batch >= 1024:
        return 1024
    return ((batch + 7) // 8) * 8


# --------------------------------------------------------------------------
# Wrapper: batch grid, resident weights, lane-dense output slab.
# --------------------------------------------------------------------------
@jax.jit
def recommender_forward(x, prep):
    batch, d = x.shape
    tile_b = _choose_tile_b(batch)
    padded = ((batch + tile_b - 1) // tile_b) * tile_b
    if padded != batch:
        x = jnp.pad(x, ((0, padded - batch), (0, 0)))
    grid = (padded // tile_b,)

    weight_args = [prep[k] for k in _PREP_ORDER]

    in_specs = [pl.BlockSpec((tile_b, d), lambda i: (i, 0))] + [
        # Full-array blocks with a constant index_map: weights/biases stay
        # resident in VMEM across all grid steps.
        pl.BlockSpec(w.shape, lambda i: (0, 0)) for w in weight_args
    ]

    out = pl.pallas_call(
        recommender_kernel,
        out_shape=jax.ShapeDtypeStruct((padded, _HEAD_PAD), jnp.float32),
        grid=grid,
        in_specs=in_specs,
        out_specs=pl.BlockSpec((tile_b, _HEAD_PAD), lambda i: (i, 0)),
        compiler_params=pltpu.CompilerParams(
            dimension_semantics=("parallel",)),
    )(x, *weight_args)

    # Real result lives in lane 0 of the lane-dense slab.
    return out[:batch, :1]


# --------------------------------------------------------------------------
# Pure-JAX references for correctness checking.
# --------------------------------------------------------------------------
def forward_ref_f32(x, p):
    """Unfolded, full-f32 reference (mirrors the PyTorch module in eval mode)."""
    def block(h, w, b, g, be, m, v):
        h = h @ w + b
        h = (h - m) / jnp.sqrt(v + BN_EPS) * g + be
        return _gelu(h)

    identity = x
    h = block(x, p["w1"], p["b1"], p["g1"], p["be1"], p["m1"], p["v1"])
    h = block(h, p["w2"], p["b2"], p["g2"], p["be2"], p["m2"], p["v2"])
    h = block(h, p["w3"], p["b3"], p["g3"], p["be3"], p["m3"], p["v3"])
    h = h + (identity @ p["ws"] + p["bs"])
    h = _gelu(h @ p["w4"] + p["b4"])
    return h @ p["w5"] + p["b5"]


def forward_ref_prepared(x, prep):
    """Reference that mirrors the kernel's exact numerics (folded BN, bf16
    weights/activations into the dots, f32 accumulation)."""
    def lin(h, w, b):
        return jnp.dot(h.astype(jnp.bfloat16), w,
                       preferred_element_type=jnp.float32) + b

    xb = x.astype(jnp.float32)
    h = _gelu(lin(xb, prep["w1"], prep["b1"]))
    h = _gelu(lin(h, prep["w2"], prep["b2"]))
    h = _gelu(lin(h, prep["w3"], prep["b3"]))
    h = h + lin(xb, prep["ws"], prep["bs"])
    h = _gelu(lin(h, prep["w4"], prep["b4"]))
    out = lin(h, prep["w5"], prep["b5"])
    return out[:, :1]


if __name__ == "__main__":
    key = jax.random.PRNGKey(0)
    k_x, k_p = jax.random.split(key)

    batch, input_dim = 8, 32
    x = jax.random.normal(k_x, (batch, input_dim), dtype=jnp.float32)

    params = init_params(k_p, input_dim)
    prep = prepare_params(params)

    out = recommender_forward(x, prep)
    out = jax.block_until_ready(out)
    assert out.shape == (batch, 1), out.shape

    # Tight check vs. a reference with identical (folded/bf16) numerics.
    ref_prep = forward_ref_prepared(x, prep)
    assert jnp.allclose(out, ref_prep, atol=2e-3, rtol=2e-3), (
        f"prepared-ref max abs diff = {jnp.max(jnp.abs(out - ref_prep))}"
    )

    # Looser check vs. the unfolded full-f32 module reference (bf16 weights).
    ref_f32 = forward_ref_f32(x, params)
    assert jnp.allclose(out, ref_f32, atol=5e-2, rtol=5e-2), (
        f"f32-ref max abs diff = {jnp.max(jnp.abs(out - ref_f32))}"
    )

    print("KERNEL_OK")
</pallas_src>

<mosaic_0001>
module attributes {stable_mosaic.version = 11 : i64} {
  func.func @recommender_kernel(%arg0: i32, %arg1: memref<8x32xf32, #tpu.memory_space<vmem>>, %arg2: memref<32x256xbf16, #tpu.memory_space<vmem>>, %arg3: memref<1x256xf32, #tpu.memory_space<vmem>>, %arg4: memref<256x128xbf16, #tpu.memory_space<vmem>>, %arg5: memref<1x128xf32, #tpu.memory_space<vmem>>, %arg6: memref<128x64xbf16, #tpu.memory_space<vmem>>, %arg7: memref<1x64xf32, #tpu.memory_space<vmem>>, %arg8: memref<32x64xbf16, #tpu.memory_space<vmem>>, %arg9: memref<1x64xf32, #tpu.memory_space<vmem>>, %arg10: memref<64x32xbf16, #tpu.memory_space<vmem>>, %arg11: memref<1x32xf32, #tpu.memory_space<vmem>>, %arg12: memref<32x128xbf16, #tpu.memory_space<vmem>>, %arg13: memref<1x128xf32, #tpu.memory_space<vmem>>, %arg14: memref<8x128xf32, #tpu.memory_space<vmem>>) attributes {dimension_semantics = [#tpu.dimension_semantics<parallel>], iteration_bounds = array<i64: 1>, scalar_prefetch = 0 : i64, scratch_operands = 0 : i64, tpu.core_type = #tpu.core_type<tc>, window_params = [{transform_indices = @transform_0, window_bounds = array<i64: 8, 32>}, {pipeline_mode = #tpu.pipeline_mode<synchronous>, transform_indices = @transform_1, window_bounds = array<i64: 32, 256>}, {pipeline_mode = #tpu.pipeline_mode<synchronous>, transform_indices = @transform_2, window_bounds = array<i64: 1, 256>}, {pipeline_mode = #tpu.pipeline_mode<synchronous>, transform_indices = @transform_3, window_bounds = array<i64: 256, 128>}, {pipeline_mode = #tpu.pipeline_mode<synchronous>, transform_indices = @transform_4, window_bounds = array<i64: 1, 128>}, {pipeline_mode = #tpu.pipeline_mode<synchronous>, transform_indices = @transform_5, window_bounds = array<i64: 128, 64>}, {pipeline_mode = #tpu.pipeline_mode<synchronous>, transform_indices = @transform_6, window_bounds = array<i64: 1, 64>}, {pipeline_mode = #tpu.pipeline_mode<synchronous>, transform_indices = @transform_7, window_bounds = array<i64: 32, 64>}, {pipeline_mode = #tpu.pipeline_mode<synchronous>, transform_indices = @transform_8, window_bounds = array<i64: 1, 64>}, {pipeline_mode = #tpu.pipeline_mode<synchronous>, transform_indices = @transform_9, window_bounds = array<i64: 64, 32>}, {pipeline_mode = #tpu.pipeline_mode<synchronous>, transform_indices = @transform_10, window_bounds = array<i64: 1, 32>}, {pipeline_mode = #tpu.pipeline_mode<synchronous>, transform_indices = @transform_11, window_bounds = array<i64: 32, 128>}, {pipeline_mode = #tpu.pipeline_mode<synchronous>, transform_indices = @transform_12, window_bounds = array<i64: 1, 128>}, {transform_indices = @transform_13, window_bounds = array<i64: 8, 128>}]} {
    %c0 = arith.constant 0 : index
    %c0_0 = arith.constant 0 : index
    %0 = vector.load %arg1[%c0, %c0_0] : memref<8x32xf32, #tpu.memory_space<vmem>>, vector<8x32xf32>
    %1 = arith.truncf %0 : vector<8x32xf32> to vector<8x32xbf16>
    %c0_1 = arith.constant 0 : index
    %c0_2 = arith.constant 0 : index
    %2 = vector.load %arg2[%c0_1, %c0_2] : memref<32x256xbf16, #tpu.memory_space<vmem>>, vector<32x256xbf16>
    %cst = arith.constant dense<0.000000e+00> : vector<8x256xf32>
    %3 = tpu.matmul %1, %2, %cst {dimension_numbers = #tpu.dot_dimension_numbers<[1], [0], [0], [1], [0, 0, 1, 1], [], []>} : vector<8x32xbf16>, vector<32x256xbf16>, vector<8x256xf32> -> vector<8x256xf32>
    %c0_3 = arith.constant 0 : index
    %c0_4 = arith.constant 0 : index
    %4 = vector.load %arg3[%c0_3, %c0_4] : memref<1x256xf32, #tpu.memory_space<vmem>>, vector<1x256xf32>
    %5 = vector.broadcast %4 : vector<1x256xf32> to vector<8x256xf32>
    %6 = arith.addf %3, %5 : vector<8x256xf32>
    %cst_5 = arith.constant 5.000000e-01 : f32
    %7 = vector.broadcast %cst_5 : f32 to vector<8x256xf32>
    %8 = arith.mulf %7, %6 : vector<8x256xf32>
    %cst_6 = arith.constant 0.707106769 : f32
    %9 = vector.broadcast %cst_6 : f32 to vector<8x256xf32>
    %10 = arith.mulf %6, %9 : vector<8x256xf32>
    %11 = math.erf %10 : vector<8x256xf32>
    %cst_7 = arith.constant 1.000000e+00 : f32
    %12 = vector.broadcast %cst_7 : f32 to vector<8x256xf32>
    %13 = arith.addf %12, %11 : vector<8x256xf32>
    %14 = arith.mulf %8, %13 : vector<8x256xf32>
    %15 = arith.truncf %14 : vector<8x256xf32> to vector<8x256xbf16>
    %c0_8 = arith.constant 0 : index
    %c0_9 = arith.constant 0 : index
    %16 = vector.load %arg4[%c0_8, %c0_9] : memref<256x128xbf16, #tpu.memory_space<vmem>>, vector<256x128xbf16>
    %cst_10 = arith.constant dense<0.000000e+00> : vector<8x128xf32>
    %17 = tpu.matmul %15, %16, %cst_10 {dimension_numbers = #tpu.dot_dimension_numbers<[1], [0], [0], [1], [0, 0, 1, 1], [], []>} : vector<8x256xbf16>, vector<256x128xbf16>, vector<8x128xf32> -> vector<8x128xf32>
    %c0_11 = arith.constant 0 : index
    %c0_12 = arith.constant 0 : index
    %18 = vector.load %arg5[%c0_11, %c0_12] : memref<1x128xf32, #tpu.memory_space<vmem>>, vector<1x128xf32>
    %19 = vector.broadcast %18 : vector<1x128xf32> to vector<8x128xf32>
    %20 = arith.addf %17, %19 : vector<8x128xf32>
    %cst_13 = arith.constant 5.000000e-01 : f32
    %21 = vector.broadcast %cst_13 : f32 to vector<8x128xf32>
    %22 = arith.mulf %21, %20 : vector<8x128xf32>
    %cst_14 = arith.constant 0.707106769 : f32
    %23 = vector.broadcast %cst_14 : f32 to vector<8x128xf32>
    %24 = arith.mulf %20, %23 : vector<8x128xf32>
    %25 = math.erf %24 : vector<8x128xf32>
    %cst_15 = arith.constant 1.000000e+00 : f32
    %26 = vector.broadcast %cst_15 : f32 to vector<8x128xf32>
    %27 = arith.addf %26, %25 : vector<8x128xf32>
    %28 = arith.mulf %22, %27 : vector<8x128xf32>
    %29 = arith.truncf %28 : vector<8x128xf32> to vector<8x128xbf16>
    %c0_16 = arith.constant 0 : index
    %c0_17 = arith.constant 0 : index
    %30 = vector.load %arg6[%c0_16, %c0_17] : memref<128x64xbf16, #tpu.memory_space<vmem>>, vector<128x64xbf16>
    %cst_18 = arith.constant dense<0.000000e+00> : vector<8x64xf32>
    %31 = tpu.matmul %29, %30, %cst_18 {dimension_numbers = #tpu.dot_dimension_numbers<[1], [0], [0], [1], [0, 0, 1, 1], [], []>} : vector<8x128xbf16>, vector<128x64xbf16>, vector<8x64xf32> -> vector<8x64xf32>
    %c0_19 = arith.constant 0 : index
    %c0_20 = arith.constant 0 : index
    %32 = vector.load %arg7[%c0_19, %c0_20] : memref<1x64xf32, #tpu.memory_space<vmem>>, vector<1x64xf32>
    %33 = vector.broadcast %32 : vector<1x64xf32> to vector<8x64xf32>
    %34 = arith.addf %31, %33 : vector<8x64xf32>
    %cst_21 = arith.constant 5.000000e-01 : f32
    %35 = vector.broadcast %cst_21 : f32 to vector<8x64xf32>
    %36 = arith.mulf %35, %34 : vector<8x64xf32>
    %cst_22 = arith.constant 0.707106769 : f32
    %37 = vector.broadcast %cst_22 : f32 to vector<8x64xf32>
    %38 = arith.mulf %34, %37 : vector<8x64xf32>
    %39 = math.erf %38 : vector<8x64xf32>
    %cst_23 = arith.constant 1.000000e+00 : f32
    %40 = vector.broadcast %cst_23 : f32 to vector<8x64xf32>
    %41 = arith.addf %40, %39 : vector<8x64xf32>
    %42 = arith.mulf %36, %41 : vector<8x64xf32>
    %c0_24 = arith.constant 0 : index
    %c0_25 = arith.constant 0 : index
    %43 = vector.load %arg8[%c0_24, %c0_25] : memref<32x64xbf16, #tpu.memory_space<vmem>>, vector<32x64xbf16>
    %cst_26 = arith.constant dense<0.000000e+00> : vector<8x64xf32>
    %44 = tpu.matmul %1, %43, %cst_26 {dimension_numbers = #tpu.dot_dimension_numbers<[1], [0], [0], [1], [0, 0, 1, 1], [], []>} : vector<8x32xbf16>, vector<32x64xbf16>, vector<8x64xf32> -> vector<8x64xf32>
    %c0_27 = arith.constant 0 : index
    %c0_28 = arith.constant 0 : index
    %45 = vector.load %arg9[%c0_27, %c0_28] : memref<1x64xf32, #tpu.memory_space<vmem>>, vector<1x64xf32>
    %46 = vector.broadcast %45 : vector<1x64xf32> to vector<8x64xf32>
    %47 = arith.addf %44, %46 : vector<8x64xf32>
    %48 = arith.addf %42, %47 : vector<8x64xf32>
    %49 = arith.truncf %48 : vector<8x64xf32> to vector<8x64xbf16>
    %c0_29 = arith.constant 0 : index
    %c0_30 = arith.constant 0 : index
    %50 = vector.load %arg10[%c0_29, %c0_30] : memref<64x32xbf16, #tpu.memory_space<vmem>>, vector<64x32xbf16>
    %cst_31 = arith.constant dense<0.000000e+00> : vector<8x32xf32>
    %51 = tpu.matmul %49, %50, %cst_31 {dimension_numbers = #tpu.dot_dimension_numbers<[1], [0], [0], [1], [0, 0, 1, 1], [], []>} : vector<8x64xbf16>, vector<64x32xbf16>, vector<8x32xf32> -> vector<8x32xf32>
    %c0_32 = arith.constant 0 : index
    %c0_33 = arith.constant 0 : index
    %52 = vector.load %arg11[%c0_32, %c0_33] : memref<1x32xf32, #tpu.memory_space<vmem>>, vector<1x32xf32>
    %53 = vector.broadcast %52 : vector<1x32xf32> to vector<8x32xf32>
    %54 = arith.addf %51, %53 : vector<8x32xf32>
    %cst_34 = arith.constant 5.000000e-01 : f32
    %55 = vector.broadcast %cst_34 : f32 to vector<8x32xf32>
    %56 = arith.mulf %55, %54 : vector<8x32xf32>
    %cst_35 = arith.constant 0.707106769 : f32
    %57 = vector.broadcast %cst_35 : f32 to vector<8x32xf32>
    %58 = arith.mulf %54, %57 : vector<8x32xf32>
    %59 = math.erf %58 : vector<8x32xf32>
    %cst_36 = arith.constant 1.000000e+00 : f32
    %60 = vector.broadcast %cst_36 : f32 to vector<8x32xf32>
    %61 = arith.addf %60, %59 : vector<8x32xf32>
    %62 = arith.mulf %56, %61 : vector<8x32xf32>
    %63 = arith.truncf %62 : vector<8x32xf32> to vector<8x32xbf16>
    %c0_37 = arith.constant 0 : index
    %c0_38 = arith.constant 0 : index
    %64 = vector.load %arg12[%c0_37, %c0_38] : memref<32x128xbf16, #tpu.memory_space<vmem>>, vector<32x128xbf16>
    %cst_39 = arith.constant dense<0.000000e+00> : vector<8x128xf32>
    %65 = tpu.matmul %63, %64, %cst_39 {dimension_numbers = #tpu.dot_dimension_numbers<[1], [0], [0], [1], [0, 0, 1, 1], [], []>} : vector<8x32xbf16>, vector<32x128xbf16>, vector<8x128xf32> -> vector<8x128xf32>
    %c0_40 = arith.constant 0 : index
    %c0_41 = arith.constant 0 : index
    %66 = vector.load %arg13[%c0_40, %c0_41] : memref<1x128xf32, #tpu.memory_space<vmem>>, vector<1x128xf32>
    %67 = vector.broadcast %66 : vector<1x128xf32> to vector<8x128xf32>
    %68 = arith.addf %65, %67 : vector<8x128xf32>
    %c0_42 = arith.constant 0 : index
    %c0_43 = arith.constant 0 : index
    %69 = vector.load %arg14[%c0_42, %c0_43] : memref<8x128xf32, #tpu.memory_space<vmem>>, vector<8x128xf32>
    tpu.vector_store %arg14[%c0_42, %c0_43], %68 {strides = array<i32>} : memref<8x128xf32, #tpu.memory_space<vmem>>, vector<8x128xf32>,
    return
  }
  func.func @transform_0(%arg0: i32) -> (i32, i32) {
    %c0_i32 = arith.constant 0 : i32
    %c0_i32_0 = arith.constant 0 : i32
    return %arg0, %c0_i32 : i32, i32
  }
  func.func @transform_1(%arg0: i32) -> (i32, i32) {
    %c0_i32 = arith.constant 0 : i32
    %c0_i32_0 = arith.constant 0 : i32
    %c0_i32_1 = arith.constant 0 : i32
    return %c0_i32, %c0_i32_0 : i32, i32
  }
  func.func @transform_2(%arg0: i32) -> (i32, i32) {
    %c0_i32 = arith.constant 0 : i32
    %c0_i32_0 = arith.constant 0 : i32
    %c0_i32_1 = arith.constant 0 : i32
    return %c0_i32, %c0_i32_0 : i32, i32
  }
  func.func @transform_3(%arg0: i32) -> (i32, i32) {
    %c0_i32 = arith.constant 0 : i32
    %c0_i32_0 = arith.constant 0 : i32
    %c0_i32_1 = arith.constant 0 : i32
    return %c0_i32, %c0_i32_0 : i32, i32
  }
  func.func @transform_4(%arg0: i32) -> (i32, i32) {
    %c0_i32 = arith.constant 0 : i32
    %c0_i32_0 = arith.constant 0 : i32
    %c0_i32_1 = arith.constant 0 : i32
    return %c0_i32, %c0_i32_0 : i32, i32
  }
  func.func @transform_5(%arg0: i32) -> (i32, i32) {
    %c0_i32 = arith.constant 0 : i32
    %c0_i32_0 = arith.constant 0 : i32
    %c0_i32_1 = arith.constant 0 : i32
    return %c0_i32, %c0_i32_0 : i32, i32
  }
  func.func @transform_6(%arg0: i32) -> (i32, i32) {
    %c0_i32 = arith.constant 0 : i32
    %c0_i32_0 = arith.constant 0 : i32
    %c0_i32_1 = arith.constant 0 : i32
    return %c0_i32, %c0_i32_0 : i32, i32
  }
  func.func @transform_7(%arg0: i32) -> (i32, i32) {
    %c0_i32 = arith.constant 0 : i32
    %c0_i32_0 = arith.constant 0 : i32
    %c0_i32_1 = arith.constant 0 : i32
    return %c0_i32, %c0_i32_0 : i32, i32
  }
  func.func @transform_8(%arg0: i32) -> (i32, i32) {
    %c0_i32 = arith.constant 0 : i32
    %c0_i32_0 = arith.constant 0 : i32
    %c0_i32_1 = arith.constant 0 : i32
    return %c0_i32, %c0_i32_0 : i32, i32
  }
  func.func @transform_9(%arg0: i32) -> (i32, i32) {
    %c0_i32 = arith.constant 0 : i32
    %c0_i32_0 = arith.constant 0 : i32
    %c0_i32_1 = arith.constant 0 : i32
    return %c0_i32, %c0_i32_0 : i32, i32
  }
  func.func @transform_10(%arg0: i32) -> (i32, i32) {
    %c0_i32 = arith.constant 0 : i32
    %c0_i32_0 = arith.constant 0 : i32
    %c0_i32_1 = arith.constant 0 : i32
    return %c0_i32, %c0_i32_0 : i32, i32
  }
  func.func @transform_11(%arg0: i32) -> (i32, i32) {
    %c0_i32 = arith.constant 0 : i32
    %c0_i32_0 = arith.constant 0 : i32
    %c0_i32_1 = arith.constant 0 : i32
    return %c0_i32, %c0_i32_0 : i32, i32
  }
  func.func @transform_12(%arg0: i32) -> (i32, i32) {
    %c0_i32 = arith.constant 0 : i32
    %c0_i32_0 = arith.constant 0 : i32
    %c0_i32_1 = arith.constant 0 : i32
    return %c0_i32, %c0_i32_0 : i32, i32
  }
  func.func @transform_13(%arg0: i32) -> (i32, i32) {
    %c0_i32 = arith.constant 0 : i32
    %c0_i32_0 = arith.constant 0 : i32
    return %arg0, %c0_i32 : i32, i32
  }
}

</mosaic_0001>

<llo_original>
// kernel: recommender_forward.1
$region0: #{recommender_forward.1}
  #allocation0 [shape = 'u32[]', space=smem, size = 0x4, offset = 0x4, fixed_abs, tag = 'smem constant byte address 0x4 - core index']
  #allocation1 [shape = 'u32[144,128]{1,0:T(1,128)}', space=vmem, size = 0x12000, scoped, tag = 'internal scratch']
  %s0 = inlined_call_operand.hbm [shape: f32[8,32], index: 0, kind: input, shape index: {}]
  %s1 = inlined_call_operand.hbm [shape: bf16[32,256], index: 1, kind: input, shape index: {}]
  %s2 = inlined_call_operand.hbm [shape: f32[1,256], index: 2, kind: input, shape index: {}]
  %s3 = inlined_call_operand.vmem [shape: bf16[256,128], index: 3, kind: input, shape index: {}]
  %s4 = inlined_call_operand.hbm [shape: f32[1,128], index: 4, kind: input, shape index: {}]
  %s5 = inlined_call_operand.vmem [shape: bf16[128,64], index: 5, kind: input, shape index: {}]
  %s6 = inlined_call_operand.hbm [shape: f32[1,64], index: 6, kind: input, shape index: {}]
  %s7 = inlined_call_operand.hbm [shape: bf16[32,64], index: 7, kind: input, shape index: {}]
  %s8 = inlined_call_operand.hbm [shape: f32[1,64], index: 8, kind: input, shape index: {}]
  %s9 = inlined_call_operand.vmem [shape: bf16[64,32], index: 9, kind: input, shape index: {}]
  %s10 = inlined_call_operand.hbm [shape: f32[1,32], index: 10, kind: input, shape index: {}]
  %s11 = inlined_call_operand.hbm [shape: bf16[32,128], index: 11, kind: input, shape index: {}]
  %s12 = inlined_call_operand.hbm [shape: f32[1,128], index: 12, kind: input, shape index: {}]
  %s13 = inlined_call_operand.vmem [shape: f32[8,128], index: 13, kind: output, shape index: {}]
  %s14 = sld [smem:[#allocation0]]
  $region102: #{recommender_forward.1} parent=0
    _
  %s16 = ssub.s32 1, %s14
  %s17 = scalar_select 0, %s16, %s14
  $region1: #{recommender_forward.1} parent=0
    #allocation2 [shape = 'u8[4096]{0}', space=vmem, size = 0x1000, scoped, tag = 'input window, operand 0, single buffered']
    #allocation3 [shape = 's32[1]{0}', space=sflag, size = 0x4, scoped, tag = 'scoped memory for recommender_forward.1']
    #allocation4 [shape = 'u8[16384]{0}', space=vmem, size = 0x4000, scoped, tag = 'input window, operand 1, single buffered']
    #allocation5 [shape = 's32[1]{0}', space=sflag, size = 0x4, scoped, tag = 'scoped memory for recommender_forward.1']
    #allocation6 [shape = 'u8[1024]{0}', space=vmem, size = 0x400, scoped, tag = 'input window, operand 2, single buffered']
    #allocation7 [shape = 'u8[512]{0}', space=vmem, size = 0x400, scoped, tag = 'input window, operand 4, single buffered']
    #allocation8 [shape = 's32[1]{0}', space=sflag, size = 0x4, scoped, tag = 'scoped memory for recommender_forward.1']
    #allocation9 [shape = 'u8[512]{0}', space=vmem, size = 0x400, scoped, tag = 'input window, operand 6, single buffered']
    #allocation10 [shape = 'u8[8192]{0}', space=vmem, size = 0x2000, scoped, tag = 'input window, operand 7, single buffered']
    #allocation11 [shape = 's32[1]{0}', space=sflag, size = 0x4, scoped, tag = 'scoped memory for recommender_forward.1']
    #allocation12 [shape = 'u8[512]{0}', space=vmem, size = 0x400, scoped, tag = 'input window, operand 8, single buffered']
    #allocation13 [shape = 'u8[512]{0}', space=vmem, size = 0x400, scoped, tag = 'input window, operand 10, single buffered']
    #allocation14 [shape = 's32[1]{0}', space=sflag, size = 0x4, scoped, tag = 'scoped memory for recommender_forward.1']
    #allocation15 [shape = 'u8[8192]{0}', space=vmem, size = 0x2000, scoped, tag = 'input window, operand 11, single buffered']
    #allocation16 [shape = 'u8[512]{0}', space=vmem, size = 0x400, scoped, tag = 'input window, operand 12, single buffered']
    #allocation17 [shape = 's32[1]{0}', space=sflag, size = 0x4, scoped, tag = 'scoped memory for recommender_forward.1']
    %18 = vsyncpa [#allocation3], 0
    %19 = vsyncpa [#allocation5], 0
    %20 = vsyncpa [#allocation8], 0
    %21 = vsyncpa [#allocation11], 0
    %22 = vsyncpa [#allocation14], 0
    %23 = vsyncpa [#allocation17], 0
    // Predicated region
    $region2: #{recommender_forward.1} parent=1 // pred_check
      _
    $region3: #{recommender_forward.1} parent=1 // pred_check_branch
      %25 = sbr.rel (0) target = $region5
    $region4: #{recommender_forward.1} parent=1 // pred_region
      %s27 = ssub.s32 128, 128
      %28 = vsyncadd [#allocation3], %s27
      %s30 = sshll.u32 [#allocation2], 4
      %s31 = int_to_ptr.vmem [resolvable:$true] %s30
      %33 = dma.hbm_to_vmem [thread:$0]  %s0, 128, %s31, [#allocation3]
    $region5: #{recommender_forward.1} parent=1 // pred_fallthru
      _
    // Predicated region
    $region6: #{recommender_forward.1} parent=1 // pred_check
      _
    $region7: #{recommender_forward.1} parent=1 // pred_check_branch
      %35 = sbr.rel (0) target = $region9
    $region8: #{recommender_forward.1} parent=1 // pred_region
      %s37 = ssub.s32 512, 512
      %38 = vsyncadd [#allocation5], %s37
      %s39 = sshll.u32 [#allocation4], 4
      %s40 = int_to_ptr.vmem [resolvable:$true] %s39
      %45 = dma.hbm_to_vmem [thread:$0]  %s1, 512, %s40, [#allocation5], 128, 128, 8
    $region9: #{recommender_forward.1} parent=1 // pred_fallthru
      _
    // Predicated region
    $region10: #{recommender_forward.1} parent=1 // pred_check
      _
    $region11: #{recommender_forward.1} parent=1 // pred_check_branch
      %47 = sbr.rel (0) target = $region13
    $region12: #{recommender_forward.1} parent=1 // pred_region
      %s49 = ssub.s32 32, 32
      %50 = vsyncadd [#allocation5], %s49
      %s52 = sshll.u32 [#allocation6], 4
      %s53 = int_to_ptr.vmem [resolvable:$true] %s52
      %55 = dma.hbm_to_vmem [thread:$0]  %s2, 32, %s53, [#allocation5]
    $region13: #{recommender_forward.1} parent=1 // pred_fallthru
      _
    // Predicated region
    $region14: #{recommender_forward.1} parent=1 // pred_check
      _
    $region15: #{recommender_forward.1} parent=1 // pred_check_branch
      %57 = sbr.rel (0) target = $region17
    $region16: #{recommender_forward.1} parent=1 // pred_region
      _
    $region17: #{recommender_forward.1} parent=1 // pred_fallthru
      _
    // Predicated region
    $region18: #{recommender_forward.1} parent=1 // pred_check
      _
    $region19: #{recommender_forward.1} parent=1 // pred_check_branch
      %59 = sbr.rel (0) target = $region21
    $region20: #{recommender_forward.1} parent=1 // pred_region
      %s61 = ssub.s32 16, 16
      %62 = vsyncadd [#allocation8], %s61
      %s64 = sshll.u32 [#allocation7], 4
      %s65 = int_to_ptr.vmem [resolvable:$true] %s64
      %67 = dma.hbm_to_vmem [thread:$0]  %s4, 16, %s65, [#allocation8]
    $region21: #{recommender_forward.1} parent=1 // pred_fallthru
      _
    // Predicated region
    $region22: #{recommender_forward.1} parent=1 // pred_check
      _
    $region23: #{recommender_forward.1} parent=1 // pred_check_branch
      %69 = sbr.rel (0) target = $region25
    $region24: #{recommender_forward.1} parent=1 // pred_region
      _
    $region25: #{recommender_forward.1} parent=1 // pred_fallthru
      _
    // Predicated region
    $region26: #{recommender_forward.1} parent=1 // pred_check
      _
    $region27: #{recommender_forward.1} parent=1 // pred_check_branch
      %71 = sbr.rel (0) target = $region29
    $region28: #{recommender_forward.1} parent=1 // pred_region
      %s73 = ssub.s32 16, 16
      %74 = vsyncadd [#allocation8], %s73
      %s76 = sshll.u32 [#allocation9], 4
      %s77 = int_to_ptr.vmem [resolvable:$true] %s76
      %79 = dma.hbm_to_vmem [thread:$0]  %s6, 16, %s77, [#allocation8]
    $region29: #{recommender_forward.1} parent=1 // pred_fallthru
      _
    // Predicated region
    $region30: #{recommender_forward.1} parent=1 // pred_check
      _
    $region31: #{recommender_forward.1} parent=1 // pred_check_branch
      %81 = sbr.rel (0) target = $region33
    $region32: #{recommender_forward.1} parent=1 // pred_region
      %s83 = ssub.s32 256, 256
      %84 = vsyncadd [#allocation11], %s83
      %s85 = sshll.u32 [#allocation10], 4
      %s86 = int_to_ptr.vmem [resolvable:$true] %s85
      %91 = dma.hbm_to_vmem [thread:$0]  %s7, 256, %s86, [#allocation11], 64, 64, 4
    $region33: #{recommender_forward.1} parent=1 // pred_fallthru
      _
    // Predicated region
    $region34: #{recommender_forward.1} parent=1 // pred_check
      _
    $region35: #{recommender_forward.1} parent=1 // pred_check_branch
      %93 = sbr.rel (0) target = $region37
    $region36: #{recommender_forward.1} parent=1 // pred_region
      %s95 = ssub.s32 16, 16
      %96 = vsyncadd [#allocation11], %s95
      %s98 = sshll.u32 [#allocation12], 4
      %s99 = int_to_ptr.vmem [resolvable:$true] %s98
      %101 = dma.hbm_to_vmem [thread:$0]  %s8, 16, %s99, [#allocation11]
    $region37: #{recommender_forward.1} parent=1 // pred_fallthru
      _
    // Predicated region
    $region38: #{recommender_forward.1} parent=1 // pred_check
      _
    $region39: #{recommender_forward.1} parent=1 // pred_check_branch
      %103 = sbr.rel (0) target = $region41
    $region40: #{recommender_forward.1} parent=1 // pred_region
      _
    $region41: #{recommender_forward.1} parent=1 // pred_fallthru
      _
    // Predicated region
    $region42: #{recommender_forward.1} parent=1 // pred_check
      _
    $region43: #{recommender_forward.1} parent=1 // pred_check_branch
      %105 = sbr.rel (0) target = $region45
    $region44: #{recommender_forward.1} parent=1 // pred_region
      %s107 = ssub.s32 16, 16
      %108 = vsyncadd [#allocation14], %s107
      %s110 = sshll.u32 [#allocation13], 4
      %s111 = int_to_ptr.vmem [resolvable:$true] %s110
      %113 = dma.hbm_to_vmem [thread:$0]  %s10, 16, %s111, [#allocation14]
    $region45: #{recommender_forward.1} parent=1 // pred_fallthru
      _
    // Predicated region
    $region46: #{recommender_forward.1} parent=1 // pred_check
      _
    $region47: #{recommender_forward.1} parent=1 // pred_check_branch
      %115 = sbr.rel (0) target = $region49
    $region48: #{recommender_forward.1} parent=1 // pred_region
      %s117 = ssub.s32 256, 256
      %118 = vsyncadd [#allocation14], %s117
      %s119 = sshll.u32 [#allocation15], 4
      %s120 = int_to_ptr.vmem [resolvable:$true] %s119
      %125 = dma.hbm_to_vmem [thread:$0]  %s11, 256, %s120, [#allocation14], 64, 64, 4
    $region49: #{recommender_forward.1} parent=1 // pred_fallthru
      _
    // Predicated region
    $region50: #{recommender_forward.1} parent=1 // pred_check
      _
    $region51: #{recommender_forward.1} parent=1 // pred_check_branch
      %127 = sbr.rel (0) target = $region53
    $region52: #{recommender_forward.1} parent=1 // pred_region
      %s129 = ssub.s32 16, 16
      %130 = vsyncadd [#allocation17], %s129
      %s132 = sshll.u32 [#allocation16], 4
      %s133 = int_to_ptr.vmem [resolvable:$true] %s132
      %135 = dma.hbm_to_vmem [thread:$0]  %s12, 16, %s133, [#allocation17]
    $region53: #{recommender_forward.1} parent=1 // pred_fallthru
      _
    // Predicated region
    $region54: #{recommender_forward.1} parent=1 // pred_check
      _
    $region55: #{recommender_forward.1} parent=1 // pred_check_branch
      %137 = sbr.rel (0) target = $region57
    $region56: #{recommender_forward.1} parent=1 // pred_region
      %138 = dma.done [#allocation3], 128
    $region57: #{recommender_forward.1} parent=1 // pred_fallthru
      _
    // Predicated region
    $region58: #{recommender_forward.1} parent=1 // pred_check
      _
    $region59: #{recommender_forward.1} parent=1 // pred_check_branch
      %140 = sbr.rel (0) target = $region61
    $region60: #{recommender_forward.1} parent=1 // pred_region
      %141 = dma.done [#allocation5], 512
    $region61: #{recommender_forward.1} parent=1 // pred_fallthru
      _
    // Predicated region
    $region62: #{recommender_forward.1} parent=1 // pred_check
      _
    $region63: #{recommender_forward.1} parent=1 // pred_check_branch
      %143 = sbr.rel (0) target = $region65
    $region64: #{recommender_forward.1} parent=1 // pred_region
      %144 = dma.done [#allocation5], 32
    $region65: #{recommender_forward.1} parent=1 // pred_fallthru
      _
    // Predicated region
    $region66: #{recommender_forward.1} parent=1 // pred_check
      _
    $region67: #{recommender_forward.1} parent=1 // pred_check_branch
      %146 = sbr.rel (0) target = $region69
    $region68: #{recommender_forward.1} parent=1 // pred_region
      %147 = dma.done [#allocation8], 16
    $region69: #{recommender_forward.1} parent=1 // pred_fallthru
      _
    // Predicated region
    $region70: #{recommender_forward.1} parent=1 // pred_check
      _
    $region71: #{recommender_forward.1} parent=1 // pred_check_branch
      %149 = sbr.rel (0) target = $region73
    $region72: #{recommender_forward.1} parent=1 // pred_region
      %150 = dma.done [#allocation8], 16
    $region73: #{recommender_forward.1} parent=1 // pred_fallthru
      _
    // Predicated region
    $region74: #{recommender_forward.1} parent=1 // pred_check
      _
    $region75: #{recommender_forward.1} parent=1 // pred_check_branch
      %152 = sbr.rel (0) target = $region77
    $region76: #{recommender_forward.1} parent=1 // pred_region
      %153 = dma.done [#allocation11], 256
    $region77: #{recommender_forward.1} parent=1 // pred_fallthru
      _
    // Predicated region
    $region78: #{recommender_forward.1} parent=1 // pred_check
      _
    $region79: #{recommender_forward.1} parent=1 // pred_check_branch
      %155 = sbr.rel (0) target = $region81
    $region80: #{recommender_forward.1} parent=1 // pred_region
      %156 = dma.done [#allocation11], 16
    $region81: #{recommender_forward.1} parent=1 // pred_fallthru
      _
    // Predicated region
    $region82: #{recommender_forward.1} parent=1 // pred_check
      _
    $region83: #{recommender_forward.1} parent=1 // pred_check_branch
      %158 = sbr.rel (0) target = $region85
    $region84: #{recommender_forward.1} parent=1 // pred_region
      %159 = dma.done [#allocation14], 16
    $region85: #{recommender_forward.1} parent=1 // pred_fallthru
      _
    // Predicated region
    $region86: #{recommender_forward.1} parent=1 // pred_check
      _
    $region87: #{recommender_forward.1} parent=1 // pred_check_branch
      %161 = sbr.rel (0) target = $region89
    $region88: #{recommender_forward.1} parent=1 // pred_region
      %162 = dma.done [#allocation14], 256
    $region89: #{recommender_forward.1} parent=1 // pred_fallthru
      _
    // Predicated region
    $region90: #{recommender_forward.1} parent=1 // pred_check
      _
    $region91: #{recommender_forward.1} parent=1 // pred_check_branch
      %164 = sbr.rel (0) target = $region93
    $region92: #{recommender_forward.1} parent=1 // pred_region
      %165 = dma.done [#allocation17], 16
    $region93: #{recommender_forward.1} parent=1 // pred_fallthru
      _
    %v167 = vld [vmem:[#allocation2] sm:$0xff]
    %v168 = vpack.c.bf16 %v167, %v167
    %v169 = vld [vmem:[#allocation4] sm:$0xff]
    %v170 = vld [vmem:[#allocation4 + $0x8] sm:$0xff]
    %v171 = vld [vmem:[#allocation4 + $0x10] sm:$0xff]
    %v172 = vld [vmem:[#allocation4 + $0x18] sm:$0xff]
    %v173 = vld [vmem:[#allocation6] sm:$0x3]
    %v175 = vlaneseq
    %v176 = vshrl.u32 %v175, 7
    %v177 = vsub.s32 0, %v176
    %v178 = vrot.slane %v173, %v177
    %v179 = vlaneseq
    %v180 = vshrl.u32 %v179, 7
    %v181 = vsub.s32 1, %v180
    %v182 = vrot.slane %v173, %v181
    %v189 = vunpack.c.l.b16 %v169
    %v190 = vunpack.c.h.b16 %v169
    %v191 = vunpack.c.l.b16 %v170
    %v192 = vunpack.c.h.b16 %v170
    %v193 = vunpack.c.l.b16 %v171
    %v194 = vunpack.c.h.b16 %v171
    %v195 = vunpack.c.l.b16 %v172
    %v196 = vunpack.c.h.b16 %v172
    %v197 = vpack.c.b16 %v191, %v189
    %v198 = vpack.c.b16 %v192, %v190
    %v199 = vpack.c.b16 %v195, %v193
    %v200 = vpack.c.b16 %v196, %v194
    %vm205 = vcmask 261120
    %v207 = vsel %vm205, %v168, 0
    %209 = vmatprep.subr.bf16.mxu0 0
    %210 = vmatpush1.bf16.msra.mxu0 0
    %211 = vmatprep.subr.bf16.mxu0 0
    %212 = vmatpush1.bf16.msra.mxu0 0
    %213 = vmatprep.subr.bf16.mxu0 0
    %214 = vmatpush1.bf16.msra.mxu0 0
    %215 = vmatprep.subr.bf16.mxu0 0
    %216 = vmatpush1.bf16.msra.mxu0 0
    %217 = vmatprep.subr.bf16.mxu0 0
    %218 = vmatpush1.bf16.msra.mxu0 0
    %219 = vmatprep.subr.bf16.mxu0 0
    %220 = vmatpush1.bf16.msra.mxu0 0
    %221 = vmatprep.subr.bf16.mxu0 %v200
    %222 = vmatpush1.bf16.msra.mxu0 %v199
    %223 = vmatprep.subr.bf16.mxu0 %v198
    %224 = vmatpush1.bf16.msra.mxu0 %v197
    %225 = vmatprep.subr.bf16.mxu0 0
    %226 = vmatpush2.bf16.msra.mxu0 0
    %227 = vmatprep.subr.bf16.mxu0 0
    %228 = vmatpush2.bf16.msra.mxu0 0
    %229 = vmatprep.subr.bf16.mxu0 0
    %230 = vmatpush2.bf16.msra.mxu0 0
    %231 = vmatprep.subr.bf16.mxu0 0
    %232 = vmatpush2.bf16.msra.mxu0 0
    %233 = vmatprep.subr.bf16.mxu0 0
    %234 = vmatpush2.bf16.msra.mxu0 0
    %235 = vmatprep.subr.bf16.mxu0 0
    %236 = vmatpush2.bf16.msra.mxu0 0
    %237 = vmatprep.subr.bf16.mxu0 0
    %238 = vmatpush2.bf16.msra.mxu0 0
    %239 = vmatprep.subr.bf16.mxu0 0
    %240 = vmatpush2.bf16.msra.mxu0 0
    %241 = vmatprep.mubr.bf16.mxu0 0
    %242 = vmatmul.mubr.bf16.gmra.mxu0 %v207
    %v243 = vpop.f32.mrf.mxu0
    %v244 = vadd.f32 %v178, %v243
    %v245 = vpop.f32.mrf.mxu0
    %v246 = vadd.f32 %v182, %v245
    %v247 = vpop.f32.mrf.mxu0
    %v248 = vpop.f32.mrf.mxu0
    %249 = vdwg.mxu0
    %v250 = vmul.f32 %v244, 0.5
    %v251 = vmul.f32 %v246, 0.5
    %v252 = vmul.f32 %v244, 0.70710677
    %v253 = vmul.f32 %v246, 0.70710677
    %v254 = verf.f32.pop %v252
    %v255 = verf.f32.pop %v253
    %v256 = vadd.f32 %v254, 1.0
    %v257 = vadd.f32 %v255, 1.0
    %v258 = vmul.f32 %v250, %v256
    %v259 = vmul.f32 %v251, %v257
    %v260 = vpack.c.bf16 %v258, %v258
    %v261 = vpack.c.bf16 %v259, %v259
    %v262 = vld [vmem:[%s3] sm:$0xf]
    %v263 = vld [vmem:[%s3 + $0x4] sm:$0xf]
    %v264 = vld [vmem:[%s3 + $0x8] sm:$0xf]
    %v265 = vld [vmem:[%s3 + $0xc] sm:$0xf]
    %v266 = vld [vmem:[%s3 + $0x10] sm:$0xf]
    %v267 = vld [vmem:[%s3 + $0x14] sm:$0xf]
    %v268 = vld [vmem:[%s3 + $0x18] sm:$0xf]
    %v269 = vld [vmem:[%s3 + $0x1c] sm:$0xf]
    %v270 = vld [vmem:[%s3 + $0x20] sm:$0xf]
    %v271 = vld [vmem:[%s3 + $0x24] sm:$0xf]
    %v272 = vld [vmem:[%s3 + $0x28] sm:$0xf]
    %v273 = vld [vmem:[%s3 + $0x2c] sm:$0xf]
    %v274 = vld [vmem:[%s3 + $0x30] sm:$0xf]
    %v275 = vld [vmem:[%s3 + $0x34] sm:$0xf]
    %v276 = vld [vmem:[%s3 + $0x38] sm:$0xf]
    %v277 = vld [vmem:[%s3 + $0x3c] sm:$0xf]
    %v278 = vld [vmem:[%s3 + $0x40] sm:$0xf]
    %v279 = vld [vmem:[%s3 + $0x44] sm:$0xf]
    %v280 = vld [vmem:[%s3 + $0x48] sm:$0xf]
    %v281 = vld [vmem:[%s3 + $0x4c] sm:$0xf]
    %v282 = vld [vmem:[%s3 + $0x50] sm:$0xf]
    %v283 = vld [vmem:[%s3 + $0x54] sm:$0xf]
    %v284 = vld [vmem:[%s3 + $0x58] sm:$0xf]
    %v285 = vld [vmem:[%s3 + $0x5c] sm:$0xf]
    %v286 = vld [vmem:[%s3 + $0x60] sm:$0xf]
    %v287 = vld [vmem:[%s3 + $0x64] sm:$0xf]
    %v288 = vld [vmem:[%s3 + $0x68] sm:$0xf]
    %v289 = vld [vmem:[%s3 + $0x6c] sm:$0xf]
    %v290 = vld [vmem:[%s3 + $0x70] sm:$0xf]
    %v291 = vld [vmem:[%s3 + $0x74] sm:$0xf]
    %v292 = vld [vmem:[%s3 + $0x78] sm:$0xf]
    %v293 = vld [vmem:[%s3 + $0x7c] sm:$0xf]
    %v294 = vld [vmem:[#allocation7] sm:$0x1]
    %v296 = vlaneseq
    %v297 = vshrl.u32 %v296, 7
    %v298 = vsub.s32 0, %v297
    %v299 = vrot.slane %v294, %v298
    %v333 = vunpack.c.l.b16 %v262
    %v334 = vunpack.c.l.b16 %v263
    %v335 = vunpack.c.l.b16 %v264
    %v336 = vunpack.c.l.b16 %v265
    %v337 = vunpack.c.l.b16 %v266
    %v338 = vunpack.c.l.b16 %v267
    %v339 = vunpack.c.l.b16 %v268
    %v340 = vunpack.c.l.b16 %v269
    %v341 = vunpack.c.l.b16 %v270
    %v342 = vunpack.c.l.b16 %v271
    %v343 = vunpack.c.l.b16 %v272
    %v344 = vunpack.c.l.b16 %v273
    %v345 = vunpack.c.l.b16 %v274
    %v346 = vunpack.c.l.b16 %v275
    %v347 = vunpack.c.l.b16 %v276
    %v348 = vunpack.c.l.b16 %v277
    %v349 = vunpack.c.l.b16 %v278
    %v350 = vunpack.c.l.b16 %v279
    %v351 = vunpack.c.l.b16 %v280
    %v352 = vunpack.c.l.b16 %v281
    %v353 = vunpack.c.l.b16 %v282
    %v354 = vunpack.c.l.b16 %v283
    %v355 = vunpack.c.l.b16 %v284
    %v356 = vunpack.c.l.b16 %v285
    %v357 = vunpack.c.l.b16 %v286
    %v358 = vunpack.c.l.b16 %v287
    %v359 = vunpack.c.l.b16 %v288
    %v360 = vunpack.c.l.b16 %v289
    %v361 = vunpack.c.l.b16 %v290
    %v362 = vunpack.c.l.b16 %v291
    %v363 = vunpack.c.l.b16 %v292
    %v364 = vunpack.c.l.b16 %v293
    %v365 = vpack.c.b16 %v334, %v333
    %v366 = vpack.c.b16 %v336, %v335
    %v367 = vpack.c.b16 %v338, %v337
    %v368 = vpack.c.b16 %v340, %v339
    %v369 = vpack.c.b16 %v342, %v341
    %v370 = vpack.c.b16 %v344, %v343
    %v371 = vpack.c.b16 %v346, %v345
    %v372 = vpack.c.b16 %v348, %v347
    %v373 = vpack.c.b16 %v350, %v349
    %v374 = vpack.c.b16 %v352, %v351
    %v375 = vpack.c.b16 %v354, %v353
    %v376 = vpack.c.b16 %v356, %v355
    %v377 = vpack.c.b16 %v358, %v357
    %v378 = vpack.c.b16 %v360, %v359
    %v379 = vpack.c.b16 %v362, %v361
    %v380 = vpack.c.b16 %v364, %v363
    %397 = vmatprep.subr.bf16.mxu0 0
    %398 = vmatpush1.bf16.msra.mxu0 %v372
    %399 = vmatprep.subr.bf16.mxu0 0
    %400 = vmatpush1.bf16.msra.mxu0 %v371
    %401 = vmatprep.subr.bf16.mxu0 0
    %402 = vmatpush1.bf16.msra.mxu0 %v370
    %403 = vmatprep.subr.bf16.mxu0 0
    %404 = vmatpush1.bf16.msra.mxu0 %v369
    %405 = vmatprep.subr.bf16.mxu0 0
    %406 = vmatpush1.bf16.msra.mxu0 %v368
    %407 = vmatprep.subr.bf16.mxu0 0
    %408 = vmatpush1.bf16.msra.mxu0 %v367
    %409 = vmatprep.subr.bf16.mxu0 0
    %410 = vmatpush1.bf16.msra.mxu0 %v366
    %411 = vmatprep.subr.bf16.mxu0 0
    %412 = vmatpush1.bf16.msra.mxu0 %v365
    %413 = vmatprep.subr.bf16.mxu0 0
    %414 = vmatpush2.bf16.msra.mxu0 %v380
    %415 = vmatprep.subr.bf16.mxu0 0
    %416 = vmatpush2.bf16.msra.mxu0 %v379
    %417 = vmatprep.subr.bf16.mxu0 0
    %418 = vmatpush2.bf16.msra.mxu0 %v378
    %419 = vmatprep.subr.bf16.mxu0 0
    %420 = vmatpush2.bf16.msra.mxu0 %v377
    %421 = vmatprep.subr.bf16.mxu0 0
    %422 = vmatpush2.bf16.msra.mxu0 %v376
    %423 = vmatprep.subr.bf16.mxu0 0
    %424 = vmatpush2.bf16.msra.mxu0 %v375
    %425 = vmatprep.subr.bf16.mxu0 0
    %426 = vmatpush2.bf16.msra.mxu0 %v374
    %427 = vmatprep.subr.bf16.mxu0 0
    %428 = vmatpush2.bf16.msra.mxu0 %v373
    %429 = vmatprep.mubr.bf16.mxu0 %v261
    %430 = vmatmul.mubr.bf16.gmra.mxu0 %v260
    %v431 = vpop.f32.mrf.mxu0
    %v432 = vadd.f32 %v299, %v431
    %v433 = vpop.f32.mrf.mxu0
    %v434 = vpop.f32.mrf.mxu0
    %v435 = vpop.f32.mrf.mxu0
    %436 = vdwg.mxu0
    %v437 = vmul.f32 %v432, 0.5
    %v438 = vmul.f32 %v432, 0.70710677
    %v439 = verf.f32.pop %v438
    %v440 = vadd.f32 %v439, 1.0
    %v441 = vmul.f32 %v437, %v440
    %v442 = vpack.c.bf16 %v441, %v441
    %v443 = vld [vmem:[%s5] sm:$0xf]
    %v444 = vld [vmem:[%s5 + $0x4] sm:$0xf]
    %v445 = vld [vmem:[%s5 + $0x8] sm:$0xf]
    %v446 = vld [vmem:[%s5 + $0xc] sm:$0xf]
    %v447 = vld [vmem:[%s5 + $0x10] sm:$0xf]
    %v448 = vld [vmem:[%s5 + $0x14] sm:$0xf]
    %v449 = vld [vmem:[%s5 + $0x18] sm:$0xf]
    %v450 = vld [vmem:[%s5 + $0x1c] sm:$0xf]
    %v451 = vld [vmem:[%s5 + $0x20] sm:$0xf]
    %v452 = vld [vmem:[%s5 + $0x24] sm:$0xf]
    %v453 = vld [vmem:[%s5 + $0x28] sm:$0xf]
    %v454 = vld [vmem:[%s5 + $0x2c] sm:$0xf]
    %v455 = vld [vmem:[%s5 + $0x30] sm:$0xf]
    %v456 = vld [vmem:[%s5 + $0x34] sm:$0xf]
    %v457 = vld [vmem:[%s5 + $0x38] sm:$0xf]
    %v458 = vld [vmem:[%s5 + $0x3c] sm:$0xf]
    %v459 = vld [vmem:[#allocation9] sm:$0x1]
    %v461 = vlaneseq
    %v462 = vshrl.u32 %v461, 7
    %v463 = vsub.s32 0, %v462
    %v464 = vrot.slane %v459, %v463
    %v482 = vunpack.c.l.b16 %v443
    %v483 = vunpack.c.l.b16 %v444
    %v484 = vunpack.c.l.b16 %v445
    %v485 = vunpack.c.l.b16 %v446
    %v486 = vunpack.c.l.b16 %v447
    %v487 = vunpack.c.l.b16 %v448
    %v488 = vunpack.c.l.b16 %v449
    %v489 = vunpack.c.l.b16 %v450
    %v490 = vunpack.c.l.b16 %v451
    %v491 = vunpack.c.l.b16 %v452
    %v492 = vunpack.c.l.b16 %v453
    %v493 = vunpack.c.l.b16 %v454
    %v494 = vunpack.c.l.b16 %v455
    %v495 = vunpack.c.l.b16 %v456
    %v496 = vunpack.c.l.b16 %v457
    %v497 = vunpack.c.l.b16 %v458
    %v498 = vpack.c.b16 %v483, %v482
    %v499 = vpack.c.b16 %v485, %v484
    %v500 = vpack.c.b16 %v487, %v486
    %v501 = vpack.c.b16 %v489, %v488
    %v502 = vpack.c.b16 %v491, %v490
    %v503 = vpack.c.b16 %v493, %v492
    %v504 = vpack.c.b16 %v495, %v494
    %v505 = vpack.c.b16 %v497, %v496
    %514 = vmatprep.subr.bf16.mxu0 0
    %515 = vmatpush1.bf16.msra.mxu0 %v505
    %516 = vmatprep.subr.bf16.mxu0 0
    %517 = vmatpush1.bf16.msra.mxu0 %v504
    %518 = vmatprep.subr.bf16.mxu0 0
    %519 = vmatpush1.bf16.msra.mxu0 %v503
    %520 = vmatprep.subr.bf16.mxu0 0
    %521 = vmatpush1.bf16.msra.mxu0 %v502
    %522 = vmatprep.subr.bf16.mxu0 0
    %523 = vmatpush1.bf16.msra.mxu0 %v501
    %524 = vmatprep.subr.bf16.mxu0 0
    %525 = vmatpush1.bf16.msra.mxu0 %v500
    %526 = vmatprep.subr.bf16.mxu0 0
    %527 = vmatpush1.bf16.msra.mxu0 %v499
    %528 = vmatprep.subr.bf16.mxu0 0
    %529 = vmatpush1.bf16.msra.mxu0 %v498
    %530 = vmatprep.subr.bf16.mxu0 0
    %531 = vmatpush2.bf16.msra.mxu0 0
    %532 = vmatprep.subr.bf16.mxu0 0
    %533 = vmatpush2.bf16.msra.mxu0 0
    %534 = vmatprep.subr.bf16.mxu0 0
    %535 = vmatpush2.bf16.msra.mxu0 0
    %536 = vmatprep.subr.bf16.mxu0 0
    %537 = vmatpush2.bf16.msra.mxu0 0
    %538 = vmatprep.subr.bf16.mxu0 0
    %539 = vmatpush2.bf16.msra.mxu0 0
    %540 = vmatprep.subr.bf16.mxu0 0
    %541 = vmatpush2.bf16.msra.mxu0 0
    %542 = vmatprep.subr.bf16.mxu0 0
    %543 = vmatpush2.bf16.msra.mxu0 0
    %544 = vmatprep.subr.bf16.mxu0 0
    %545 = vmatpush2.bf16.msra.mxu0 0
    %546 = vmatprep.mubr.bf16.mxu0 0
    %547 = vmatmul.mubr.bf16.gmra.mxu0 %v442
    %v548 = vpop.f32.mrf.mxu0
    %v549 = vadd.f32 %v464, %v548
    %v550 = vpop.f32.mrf.mxu0
    %v551 = vpop.f32.mrf.mxu0
    %v552 = vpop.f32.mrf.mxu0
    %553 = vdwg.mxu0
    %v554 = vmul.f32 %v549, 0.5
    %v555 = vmul.f32 %v549, 0.70710677
    %v556 = verf.f32.pop %v555
    %v557 = vadd.f32 %v556, 1.0
    %v558 = vmul.f32 %v554, %v557
    %v559 = vld [vmem:[#allocation10] sm:$0xf]
    %v560 = vld [vmem:[#allocation10 + $0x4] sm:$0xf]
    %v561 = vld [vmem:[#allocation10 + $0x8] sm:$0xf]
    %v562 = vld [vmem:[#allocation10 + $0xc] sm:$0xf]
    %v563 = vld [vmem:[#allocation12] sm:$0x1]
    %v565 = vlaneseq
    %v566 = vshrl.u32 %v565, 7
    %v567 = vsub.s32 0, %v566
    %v568 = vrot.slane %v563, %v567
    %v574 = vunpack.c.l.b16 %v559
    %v575 = vunpack.c.l.b16 %v560
    %v576 = vunpack.c.l.b16 %v561
    %v577 = vunpack.c.l.b16 %v562
    %v578 = vpack.c.b16 %v575, %v574
    %v579 = vpack.c.b16 %v577, %v576
    %582 = vmatprep.subr.bf16.mxu0 0
    %583 = vmatpush1.bf16.msra.mxu0 0
    %584 = vmatprep.subr.bf16.mxu0 0
    %585 = vmatpush1.bf16.msra.mxu0 0
    %586 = vmatprep.subr.bf16.mxu0 0
    %587 = vmatpush1.bf16.msra.mxu0 0
    %588 = vmatprep.subr.bf16.mxu0 0
    %589 = vmatpush1.bf16.msra.mxu0 0
    %590 = vmatprep.subr.bf16.mxu0 0
    %591 = vmatpush1.bf16.msra.mxu0 0
    %592 = vmatprep.subr.bf16.mxu0 0
    %593 = vmatpush1.bf16.msra.mxu0 0
    %594 = vmatprep.subr.bf16.mxu0 0
    %595 = vmatpush1.bf16.msra.mxu0 %v579
    %596 = vmatprep.subr.bf16.mxu0 0
    %597 = vmatpush1.bf16.msra.mxu0 %v578
    %598 = vmatprep.subr.bf16.mxu0 0
    %599 = vmatpush2.bf16.msra.mxu0 0
    %600 = vmatprep.subr.bf16.mxu0 0
    %601 = vmatpush2.bf16.msra.mxu0 0
    %602 = vmatprep.subr.bf16.mxu0 0
    %603 = vmatpush2.bf16.msra.mxu0 0
    %604 = vmatprep.subr.bf16.mxu0 0
    %605 = vmatpush2.bf16.msra.mxu0 0
    %606 = vmatprep.subr.bf16.mxu0 0
    %607 = vmatpush2.bf16.msra.mxu0 0
    %608 = vmatprep.subr.bf16.mxu0 0
    %609 = vmatpush2.bf16.msra.mxu0 0
    %610 = vmatprep.subr.bf16.mxu0 0
    %611 = vmatpush2.bf16.msra.mxu0 0
    %612 = vmatprep.subr.bf16.mxu0 0
    %613 = vmatpush2.bf16.msra.mxu0 0
    %614 = vmatprep.mubr.bf16.mxu0 0
    %615 = vmatmul.mubr.bf16.gmra.mxu0 %v207
    %v616 = vpop.f32.mrf.mxu0
    %v617 = vadd.f32 %v568, %v616
    %v618 = vpop.f32.mrf.mxu0
    %v619 = vpop.f32.mrf.mxu0
    %v620 = vpop.f32.mrf.mxu0
    %621 = vdwg.mxu0
    %v622 = vadd.f32 %v558, %v617
    %v623 = vpack.c.bf16 %v622, %v622
    %v624 = vld [vmem:[%s9] sm:$0xf]
    %v625 = vld [vmem:[%s9 + $0x4] sm:$0xf]
    %v626 = vld [vmem:[%s9 + $0x8] sm:$0xf]
    %v627 = vld [vmem:[%s9 + $0xc] sm:$0xf]
    %v628 = vld [vmem:[%s9 + $0x10] sm:$0xf]
    %v629 = vld [vmem:[%s9 + $0x14] sm:$0xf]
    %v630 = vld [vmem:[%s9 + $0x18] sm:$0xf]
    %v631 = vld [vmem:[%s9 + $0x1c] sm:$0xf]
    %v632 = vld [vmem:[#allocation13] sm:$0x1]
    %v634 = vlaneseq
    %v635 = vshrl.u32 %v634, 7
    %v636 = vsub.s32 0, %v635
    %v637 = vrot.slane %v632, %v636
    %v647 = vunpack.c.l.b16 %v624
    %v648 = vunpack.c.l.b16 %v625
    %v649 = vunpack.c.l.b16 %v626
    %v650 = vunpack.c.l.b16 %v627
    %v651 = vunpack.c.l.b16 %v628
    %v652 = vunpack.c.l.b16 %v629
    %v653 = vunpack.c.l.b16 %v630
    %v654 = vunpack.c.l.b16 %v631
    %v655 = vpack.c.b16 %v648, %v647
    %v656 = vpack.c.b16 %v650, %v649
    %v657 = vpack.c.b16 %v652, %v651
    %v658 = vpack.c.b16 %v654, %v653
    %vm663 = vcmask 523264
    %v665 = vsel %vm663, %v623, 0
    %667 = vmatprep.subr.bf16.mxu0 0
    %668 = vmatpush1.bf16.msra.mxu0 0
    %669 = vmatprep.subr.bf16.mxu0 0
    %670 = vmatpush1.bf16.msra.mxu0 0
    %671 = vmatprep.subr.bf16.mxu0 0
    %672 = vmatpush1.bf16.msra.mxu0 0
    %673 = vmatprep.subr.bf16.mxu0 0
    %674 = vmatpush1.bf16.msra.mxu0 0
    %675 = vmatprep.subr.bf16.mxu0 0
    %676 = vmatpush1.bf16.msra.mxu0 %v658
    %677 = vmatprep.subr.bf16.mxu0 0
    %678 = vmatpush1.bf16.msra.mxu0 %v657
    %679 = vmatprep.subr.bf16.mxu0 0
    %680 = vmatpush1.bf16.msra.mxu0 %v656
    %681 = vmatprep.subr.bf16.mxu0 0
    %682 = vmatpush1.bf16.msra.mxu0 %v655
    %683 = vmatprep.subr.bf16.mxu0 0
    %684 = vmatpush2.bf16.msra.mxu0 0
    %685 = vmatprep.subr.bf16.mxu0 0
    %686 = vmatpush2.bf16.msra.mxu0 0
    %687 = vmatprep.subr.bf16.mxu0 0
    %688 = vmatpush2.bf16.msra.mxu0 0
    %689 = vmatprep.subr.bf16.mxu0 0
    %690 = vmatpush2.bf16.msra.mxu0 0
    %691 = vmatprep.subr.bf16.mxu0 0
    %692 = vmatpush2.bf16.msra.mxu0 0
    %693 = vmatprep.subr.bf16.mxu0 0
    %694 = vmatpush2.bf16.msra.mxu0 0
    %695 = vmatprep.subr.bf16.mxu0 0
    %696 = vmatpush2.bf16.msra.mxu0 0
    %697 = vmatprep.subr.bf16.mxu0 0
    %698 = vmatpush2.bf16.msra.mxu0 0
    %699 = vmatprep.mubr.bf16.mxu0 0
    %700 = vmatmul.mubr.bf16.gmra.mxu0 %v665
    %v701 = vpop.f32.mrf.mxu0
    %v702 = vadd.f32 %v637, %v701
    %v703 = vpop.f32.mrf.mxu0
    %v704 = vpop.f32.mrf.mxu0
    %v705 = vpop.f32.mrf.mxu0
    %706 = vdwg.mxu0
    %v707 = vmul.f32 %v702, 0.5
    %v708 = vmul.f32 %v702, 0.70710677
    %v709 = verf.f32.pop %v708
    %v710 = vadd.f32 %v709, 1.0
    %v711 = vmul.f32 %v707, %v710
    %v712 = vpack.c.bf16 %v711, %v711
    %v713 = vld [vmem:[#allocation15] sm:$0xf]
    %v714 = vld [vmem:[#allocation15 + $0x4] sm:$0xf]
    %v715 = vld [vmem:[#allocation15 + $0x8] sm:$0xf]
    %v716 = vld [vmem:[#allocation15 + $0xc] sm:$0xf]
    %v717 = vld [vmem:[#allocation16] sm:$0x1]
    %v719 = vlaneseq
    %v720 = vshrl.u32 %v719, 7
    %v721 = vsub.s32 0, %v720
    %v722 = vrot.slane %v717, %v721
    %v728 = vunpack.c.l.b16 %v713
    %v729 = vunpack.c.l.b16 %v714
    %v730 = vunpack.c.l.b16 %v715
    %v731 = vunpack.c.l.b16 %v716
    %v732 = vpack.c.b16 %v729, %v728
    %v733 = vpack.c.b16 %v731, %v730
    %v737 = vsel %vm205, %v712, 0
    %739 = vmatprep.subr.bf16.mxu0 0
    %740 = vmatpush1.bf16.msra.mxu0 0
    %741 = vmatprep.subr.bf16.mxu0 0
    %742 = vmatpush1.bf16.msra.mxu0 0
    %743 = vmatprep.subr.bf16.mxu0 0
    %744 = vmatpush1.bf16.msra.mxu0 0
    %745 = vmatprep.subr.bf16.mxu0 0
    %746 = vmatpush1.bf16.msra.mxu0 0
    %747 = vmatprep.subr.bf16.mxu0 0
    %748 = vmatpush1.bf16.msra.mxu0 0
    %749 = vmatprep.subr.bf16.mxu0 0
    %750 = vmatpush1.bf16.msra.mxu0 0
    %751 = vmatprep.subr.bf16.mxu0 0
    %752 = vmatpush1.bf16.msra.mxu0 %v733
    %753 = vmatprep.subr.bf16.mxu0 0
    %754 = vmatpush1.bf16.msra.mxu0 %v732
    %755 = vmatprep.subr.bf16.mxu0 0
    %756 = vmatpush2.bf16.msra.mxu0 0
    %757 = vmatprep.subr.bf16.mxu0 0
    %758 = vmatpush2.bf16.msra.mxu0 0
    %759 = vmatprep.subr.bf16.mxu0 0
    %760 = vmatpush2.bf16.msra.mxu0 0
    %761 = vmatprep.subr.bf16.mxu0 0
    %762 = vmatpush2.bf16.msra.mxu0 0
    %763 = vmatprep.subr.bf16.mxu0 0
    %764 = vmatpush2.bf16.msra.mxu0 0
    %765 = vmatprep.subr.bf16.mxu0 0
    %766 = vmatpush2.bf16.msra.mxu0 0
    %767 = vmatprep.subr.bf16.mxu0 0
    %768 = vmatpush2.bf16.msra.mxu0 0
    %769 = vmatprep.subr.bf16.mxu0 0
    %770 = vmatpush2.bf16.msra.mxu0 0
    %771 = vmatprep.mubr.bf16.mxu0 0
    %772 = vmatmul.mubr.bf16.gmra.mxu0 %v737
    %v773 = vpop.f32.mrf.mxu0
    %v774 = vadd.f32 %v722, %v773
    %v775 = vpop.f32.mrf.mxu0
    %v776 = vpop.f32.mrf.mxu0
    %v777 = vpop.f32.mrf.mxu0
    %778 = vdwg.mxu0
    %779 = vst [vmem:[%s13] sm:$0xff] %v774
    // Predicated region
    $region94: #{recommender_forward.1} parent=1 // pred_check
      _
    $region95: #{recommender_forward.1} parent=1 // pred_check_branch
      %781 = sbr.rel (0) target = $region97
    $region96: #{recommender_forward.1} parent=1 // pred_region
      _
    $region97: #{recommender_forward.1} parent=1 // pred_fallthru
      _
    // Predicated region
    $region98: #{recommender_forward.1} parent=1 // pred_check
      _
    $region99: #{recommender_forward.1} parent=1 // pred_check_branch
      %783 = sbr.rel (0) target = $region101
    $region100: #{recommender_forward.1} parent=1 // pred_region
      _
    $region101: #{recommender_forward.1} parent=1 // pred_fallthru
      _
    %784 = vsyncpa [#allocation3], 1
    %785 = vsyncpa [#allocation5], 1
    %786 = vsyncpa [#allocation8], 1
    %787 = vsyncpa [#allocation11], 1
    %788 = vsyncpa [#allocation14], 1
    %789 = vsyncpa [#allocation17], 1

</llo_original>
